<compile_context>
chip_gen: v7x
topology: tpu7x:2x2x1
jax: 0.10.0
libtpu: 0.0.40
codegen_flags: <defaults>
</compile_context>

<pallas_src>
from typing import List, Optional

import jax
import jax.numpy as jnp
from jax import lax
from jax.experimental import pallas as pl
from jax.experimental.pallas import tpu as pltpu

EMBED_DIM = 300          # module asserts embeddings.shape[-1] == 300
LANE = 128
ONEHOT_MAX_V = 2048      # one-hot MXU gather only when the vocab is this small
MAX_ROWS_PER_STEP = 128  # VMEM paths: rows gathered per grid step
HBM_ROWS_PER_STEP = 32   # HBM fallback: row DMAs kept in flight per grid step
VMEM_HEADROOM = 8 << 20  # leave room for Mosaic scratch + output double-buffers


def _round_up(x: int, m: int) -> int:
    return ((x + m - 1) // m) * m


def _vmem_capacity_bytes() -> int:
    """Physical VMEM per TensorCore; conservative default if the query fails."""
    try:
        return int(pltpu.get_tpu_info().vmem_capacity_bytes)
    except Exception:
        return 64 << 20  # v7x is the smallest generation (64 MiB / TC)


def _rows_per_step(batch: int, cap: int) -> int:
    return int(min(cap, max(8, _round_up(max(batch, 1), 8))))


def _choose_path(V: int, Dp: int, itemsize: int, force_path: Optional[str]) -> str:
    if force_path is not None:
        assert force_path in ("onehot", "rows", "hbm")
        return force_path
    table_bytes = V * Dp * itemsize
    out_block_bytes = MAX_ROWS_PER_STEP * Dp * itemsize
    # Table is a single un-tiled VMEM operand (1x); output block double-buffered.
    resident_need = table_bytes + 2 * out_block_bytes + (1 << 20)
    if resident_need <= _vmem_capacity_bytes() - VMEM_HEADROOM:
        return "onehot" if V <= ONEHOT_MAX_V else "rows"
    return "hbm"


# ---------------------------------------------------------------------------
# Path "onehot": table resident in VMEM, gather as a dense one-hot MXU matmul.
# ---------------------------------------------------------------------------
def _gather_onehot_kernel(idx_ref, table_ref, out_ref):
    # idx_ref  : (R, 1) int32 block of row indices for this grid step (VMEM).
    # table_ref: (V, Dp) full table, single copy resident in VMEM.
    # out_ref  : (R, Dp) output block.
    v = table_ref.shape[0]
    idx = idx_ref[...]                                               # (R, 1)
    col = lax.broadcasted_iota(jnp.int32, (idx.shape[0], v), 1)      # (R, V)
    onehot = (col == idx).astype(table_ref.dtype)                    # (R, V)
    out_ref[...] = jnp.dot(
        onehot, table_ref[...], preferred_element_type=jnp.float32
    ).astype(out_ref.dtype)


# ---------------------------------------------------------------------------
# Path "rows": table resident in VMEM, chunked row-copy gather.
# ---------------------------------------------------------------------------
def _gather_rows_vmem_kernel(idx_ref, table_ref, out_ref):
    # idx_ref  : SMEM (B_pad,) int32 scalar-prefetched indices.
    # table_ref: (V, Dp) full table, single copy resident in VMEM.
    # out_ref  : (R, Dp) output block.
    rows = out_ref.shape[0]
    base = pl.program_id(0) * rows

    def body(r, carry):
        row = idx_ref[base + r]
        out_ref[pl.ds(r, 1), :] = table_ref[pl.ds(row, 1), :]
        return carry

    lax.fori_loop(0, rows, body, None, unroll=8)


# ---------------------------------------------------------------------------
# Path "hbm": table stays in HBM; R row DMAs in flight, landing in out_ref.
# ---------------------------------------------------------------------------
def _gather_rows_hbm_kernel(idx_ref, table_hbm, out_ref, sems):
    # idx_ref  : SMEM (B_pad,) int32 scalar-prefetched indices.
    # table_hbm: (V, Dp) table left in HBM (memory_space=pl.ANY).
    # out_ref  : (R, Dp) output block; row DMAs land here directly (no copy).
    # sems     : (R,) DMA semaphores -> R row DMAs in flight at once.
    # TODO(synk): further wins (not implemented): coalesce runs of consecutive
    # rows into multi-row DMAs and double-buffer the fetches across grid steps.
    rows = out_ref.shape[0]
    base = pl.program_id(0) * rows
    copies = []
    for r in range(rows):                       # static unroll, rows <= 32
        row = idx_ref[base + r]
        cp = pltpu.make_async_copy(
            table_hbm.at[pl.ds(row, 1), :],
            out_ref.at[pl.ds(r, 1), :],
            sems.at[r],
        )
        cp.start()
        copies.append(cp)
    for cp in copies:                           # reuse the original descriptors
        cp.wait()


def embedding_lookup_pallas(
    indices: jax.Array,
    table: jax.Array,
    *,
    out_dim: Optional[int] = None,
    force_path: Optional[str] = None,
) -> jax.Array:
    """Gather rows `table[indices]` on TPU with a Pallas kernel.

    `table` must have its last dim padded to a multiple of 128.
    Returns (len(indices), out_dim).
    """
    assert table.ndim == 2 and indices.ndim == 1
    V, Dp = int(table.shape[0]), int(table.shape[1])
    assert Dp % LANE == 0, "table last dim must be lane-padded (multiple of 128)"
    B = int(indices.shape[0])
    out_dim = Dp if out_dim is None else out_dim
    itemsize = jnp.dtype(table.dtype).itemsize

    path = _choose_path(V, Dp, itemsize, force_path)
    rows = _rows_per_step(B, MAX_ROWS_PER_STEP if path != "hbm" else HBM_ROWS_PER_STEP)
    B_pad = max(_round_up(B, rows), rows)
    num_steps = B_pad // rows

    # Clamp (VMEM refs have no bounds check) and pad the batch; padded slots
    # gather row 0 and are sliced off below.
    idx = jnp.clip(indices.astype(jnp.int32), 0, V - 1)
    idx = jnp.zeros((B_pad,), jnp.int32).at[:B].set(idx)

    table_bytes = V * Dp * itemsize
    out_bytes = B_pad * Dp * itemsize
    out_block_bytes = rows * Dp * itemsize
    vmem_budget = _vmem_capacity_bytes()
    resident_need = table_bytes + 2 * out_block_bytes + (1 << 20)
    vmem_limit = int(min(max(resident_need + (8 << 20), 32 << 20),
                         vmem_budget - (4 << 20)))
    # Only shard the batch axis across TensorCores (v7x) when the grid is big
    # enough to amortize a second copy of the table being staged.
    dims = ("parallel",) if num_steps >= 8 else ("arbitrary",)

    if path == "onehot":
        cost = pl.CostEstimate(
            flops=int(2 * B_pad * V * Dp), transcendentals=0,
            bytes_accessed=int(table_bytes + out_bytes))
        out = pl.pallas_call(
            _gather_onehot_kernel,
            grid=(num_steps,),
            in_specs=[
                pl.BlockSpec((rows, 1), lambda i: (i, 0)),
                # Whole table as one un-tiled VMEM operand: single resident copy.
                pl.BlockSpec(memory_space=pltpu.MemorySpace.VMEM),
            ],
            out_specs=pl.BlockSpec((rows, Dp), lambda i: (i, 0)),
            out_shape=jax.ShapeDtypeStruct((B_pad, Dp), table.dtype),
            compiler_params=pltpu.CompilerParams(
                dimension_semantics=dims, vmem_limit_bytes=vmem_limit),
            cost_estimate=cost,
        )(idx.reshape(B_pad, 1), table)
    elif path == "rows":
        cost = pl.CostEstimate(
            flops=0, transcendentals=0,
            bytes_accessed=int(table_bytes + out_bytes))
        grid_spec = pltpu.PrefetchScalarGridSpec(
            num_scalar_prefetch=1,
            grid=(num_steps,),
            in_specs=[pl.BlockSpec(memory_space=pltpu.MemorySpace.VMEM)],
            out_specs=pl.BlockSpec((rows, Dp), lambda i, idx_ref: (i, 0)),
        )
        out = pl.pallas_call(
            _gather_rows_vmem_kernel,
            grid_spec=grid_spec,
            out_shape=jax.ShapeDtypeStruct((B_pad, Dp), table.dtype),
            compiler_params=pltpu.CompilerParams(
                dimension_semantics=dims, vmem_limit_bytes=vmem_limit),
            cost_estimate=cost,
        )(idx, table)
    else:  # "hbm"
        cost = pl.CostEstimate(
            flops=0, transcendentals=0,
            bytes_accessed=int(2 * out_bytes))   # only gathered rows, not full table
        grid_spec = pltpu.PrefetchScalarGridSpec(
            num_scalar_prefetch=1,
            grid=(num_steps,),
            in_specs=[pl.BlockSpec(memory_space=pl.ANY)],      # raw HBM ref
            out_specs=pl.BlockSpec((rows, Dp), lambda i, idx_ref: (i, 0)),
            scratch_shapes=[pltpu.SemaphoreType.DMA((rows,))],
        )
        out = pl.pallas_call(
            _gather_rows_hbm_kernel,
            grid_spec=grid_spec,
            out_shape=jax.ShapeDtypeStruct((B_pad, Dp), table.dtype),
            compiler_params=pltpu.CompilerParams(dimension_semantics=dims),
            cost_estimate=cost,
        )(idx, table)

    if B_pad != B or out_dim != Dp:
        out = out[:B, :out_dim]   # single lane-trim at the very end
    return out


class CustomNewsEncoder:
    """JAX/Pallas re-implementation of the PyTorch CustomNewsEncoder.

    Parameters are initialized deterministically in-script instead of being
    loaded from an `embedding_path` checkpoint.
    """

    def __init__(self, num_news: int, key: jax.Array):
        news_ids = [f"N{i}" for i in range(num_news)]
        # Frozen pretrained embedding table (synthetic, deterministic, f32).
        self.embedding_weight = jax.random.normal(
            key, (num_news, EMBED_DIM), dtype=jnp.float32)
        # Pad the stored table once: 300 -> 384 lanes (3 x 128), lane-aligned.
        pad = _round_up(EMBED_DIM, LANE) - EMBED_DIM
        self.embedding_weight_padded = jnp.pad(
            self.embedding_weight, ((0, 0), (0, pad)))
        self.news_id_to_index = {nid: i for i, nid in enumerate(news_ids)}

    def forward(self, news_ids: List[str]) -> jax.Array:
        # Host-side glue: string id -> integer index (same as the torch code).
        idx = jnp.asarray(
            [self.news_id_to_index[nid] for nid in news_ids], dtype=jnp.int32)
        # Duplicates are gathered directly in-kernel (no host dedup / take).
        embeddings = embedding_lookup_pallas(
            idx, self.embedding_weight_padded, out_dim=EMBED_DIM)
        assert embeddings.shape[-1] == 300, (
            f"Embedding dim mismatch: {embeddings.shape}")
        return embeddings

    __call__ = forward


if __name__ == "__main__":
    key = jax.random.PRNGKey(0)

    num_news = 16  # vocabulary size (number of entries in embeddings_dict)
    encoder = CustomNewsEncoder(num_news=num_news, key=key)

    # Batch of 10 news-id strings (with repeats, like a real request;
    # 10 is deliberately not a multiple of 8 to exercise batch padding).
    batch_ids = ["N3", "N0", "N7", "N3", "N15", "N8", "N1", "N12", "N3", "N9"]

    out = jax.block_until_ready(encoder(batch_ids))

    # Correctness check against plain-JAX gather.
    ref_idx = jnp.asarray(
        [encoder.news_id_to_index[n] for n in batch_ids], dtype=jnp.int32)
    ref = encoder.embedding_weight[ref_idx]
    assert out.shape == (len(batch_ids), EMBED_DIM), out.shape
    assert out.dtype == jnp.float32
    assert jnp.allclose(out, ref), "one-hot MXU gather mismatch"

    # Also exercise the VMEM row-gather path (mid-size vocabularies).
    out_rows = jax.block_until_ready(
        embedding_lookup_pallas(ref_idx, encoder.embedding_weight_padded,
                                out_dim=EMBED_DIM, force_path="rows"))
    assert out_rows.shape == (len(batch_ids), EMBED_DIM), out_rows.shape
    assert jnp.allclose(out_rows, ref), "VMEM row-gather mismatch"

    # And the HBM multi-DMA fallback (used when the table exceeds VMEM).
    out_hbm = jax.block_until_ready(
        embedding_lookup_pallas(ref_idx, encoder.embedding_weight_padded,
                                out_dim=EMBED_DIM, force_path="hbm"))
    assert out_hbm.shape == (len(batch_ids), EMBED_DIM), out_hbm.shape
    assert jnp.allclose(out_hbm, ref), "HBM DMA gather mismatch"

    print("KERNEL_OK")
</pallas_src>

<mosaic_0001>
module attributes {stable_mosaic.version = 11 : i64} {
  func.func @_gather_onehot_kernel(%arg0: i32, %arg1: memref<16x1xi32, #tpu.memory_space<vmem>>, %arg2: memref<16x384xf32, #tpu.memory_space<vmem>>, %arg3: memref<16x384xf32, #tpu.memory_space<vmem>>) attributes {dimension_semantics = [#tpu.dimension_semantics<arbitrary>], iteration_bounds = array<i64: 1>, scalar_prefetch = 0 : i64, scratch_operands = 0 : i64, tpu.core_type = #tpu.core_type<tc>, window_params = [{transform_indices = @transform_0, window_bounds = array<i64: 16, 1>}, {pipeline_mode = #tpu.pipeline_mode<synchronous>, transform_indices = @transform_1, window_bounds = array<i64: 16, 384>}, {transform_indices = @transform_2, window_bounds = array<i64: 16, 384>}]} {
    %c0 = arith.constant 0 : index
    %c0_0 = arith.constant 0 : index
    %0 = vector.load %arg1[%c0, %c0_0] : memref<16x1xi32, #tpu.memory_space<vmem>>, vector<16x1xi32>
    %1 = tpu.iota {dimensions = array<i32: 1>} : vector<16x16xi32>
    %2 = vector.broadcast %0 : vector<16x1xi32> to vector<16x16xi32>
    %3 = arith.cmpi eq, %1, %2 : vector<16x16xi32>
    %4 = arith.extui %3 : vector<16x16xi1> to vector<16x16xi32>
    %5 = arith.sitofp %4 : vector<16x16xi32> to vector<16x16xf32>
    %c0_1 = arith.constant 0 : index
    %c0_2 = arith.constant 0 : index
    %6 = vector.load %arg2[%c0_1, %c0_2] : memref<16x384xf32, #tpu.memory_space<vmem>>, vector<16x384xf32>
    %cst = arith.constant dense<0.000000e+00> : vector<16x384xf32>
    %7 = tpu.matmul %5, %6, %cst {dimension_numbers = #tpu.dot_dimension_numbers<[1], [0], [0], [1], [0, 0, 1, 1], [], []>} : vector<16x16xf32>, vector<16x384xf32>, vector<16x384xf32> -> vector<16x384xf32>
    %c0_3 = arith.constant 0 : index
    %c0_4 = arith.constant 0 : index
    %8 = vector.load %arg3[%c0_3, %c0_4] : memref<16x384xf32, #tpu.memory_space<vmem>>, vector<16x384xf32>
    tpu.vector_store %arg3[%c0_3, %c0_4], %7 {strides = array<i32>} : memref<16x384xf32, #tpu.memory_space<vmem>>, vector<16x384xf32>,
    return
  }
  func.func @transform_0(%arg0: i32) -> (i32, i32) {
    %c0_i32 = arith.constant 0 : i32
    %c0_i32_0 = arith.constant 0 : i32
    return %arg0, %c0_i32 : i32, i32
  }
  func.func @transform_1(%arg0: i32) -> (i32, i32) {
    %c0_i32 = arith.constant 0 : i32
    %c0_i32_0 = arith.constant 0 : i32
    %c0_i32_1 = arith.constant 0 : i32
    return %c0_i32, %c0_i32_0 : i32, i32
  }
  func.func @transform_2(%arg0: i32) -> (i32, i32) {
    %c0_i32 = arith.constant 0 : i32
    %c0_i32_0 = arith.constant 0 : i32
    return %arg0, %c0_i32 : i32, i32
  }
}

</mosaic_0001>

<llo_original>
// kernel: tpu_custom_call.1
$region0: #{tpu_custom_call.1}
  #allocation0 [shape = 'u32[]', space=smem, size = 0x4, offset = 0x4, fixed_abs, tag = 'smem constant byte address 0x4 - core index']
  #allocation1 [shape = 'u32[144,128]{1,0:T(1,128)}', space=vmem, size = 0x12000, scoped, tag = 'internal scratch']
  %s0 = inlined_call_operand.vmem [shape: s32[16,1], index: 0, kind: input, shape index: {}]
  %s1 = inlined_call_operand.hbm [shape: f32[16,384], index: 1, kind: input, shape index: {}]
  %s2 = inlined_call_operand.hbm [shape: f32[16,384], index: 2, kind: output, shape index: {}]
  %s3 = sld [smem:[#allocation0]]
  $region22: #{tpu_custom_call.1} parent=0
    _
  %s5 = ssub.s32 1, %s3
  %s6 = scalar_select 0, %s5, %s3
  $region1: #{tpu_custom_call.1} parent=0
    #allocation2 [shape = 'u8[24576]{0}', space=vmem, size = 0x6000, scoped, tag = 'input window, operand 1, single buffered']
    #allocation3 [shape = 's32[1]{0}', space=sflag, size = 0x4, scoped, tag = 'scoped memory for tpu_custom_call.1']
    #allocation4 [shape = 's32[1]{0}', space=sflag, size = 0x4, scoped, tag = 'scoped memory for tpu_custom_call.1']
    #allocation5 [shape = 'u8[24576]{0}', space=vmem, size = 0x6000, scoped, tag = 'output window, operand 0, single buffered']
    %7 = vsyncpa [#allocation3], 0
    %8 = vsyncpa [#allocation4], 0
    // Predicated region
    $region2: #{tpu_custom_call.1} parent=1 // pred_check
      _
    $region3: #{tpu_custom_call.1} parent=1 // pred_check_branch
      %10 = sbr.rel (0) target = $region5
    $region4: #{tpu_custom_call.1} parent=1 // pred_region
      _
    $region5: #{tpu_custom_call.1} parent=1 // pred_fallthru
      _
    // Predicated region
    $region6: #{tpu_custom_call.1} parent=1 // pred_check
      _
    $region7: #{tpu_custom_call.1} parent=1 // pred_check_branch
      %12 = sbr.rel (0) target = $region9
    $region8: #{tpu_custom_call.1} parent=1 // pred_region
      %s14 = ssub.s32 768, 768
      %15 = vsyncadd [#allocation3], %s14
      %s16 = sshll.u32 [#allocation2], 4
      %s17 = int_to_ptr.vmem [resolvable:$true] %s16
      %22 = dma.hbm_to_vmem [thread:$0]  %s1, 768, %s17, [#allocation3], 384, 384, 24
    $region9: #{tpu_custom_call.1} parent=1 // pred_fallthru
      _
    // Predicated region
    $region10: #{tpu_custom_call.1} parent=1 // pred_check
      _
    $region11: #{tpu_custom_call.1} parent=1 // pred_check_branch
      %24 = sbr.rel (0) target = $region13
    $region12: #{tpu_custom_call.1} parent=1 // pred_region
      %25 = dma.done [#allocation3], 768
    $region13: #{tpu_custom_call.1} parent=1 // pred_fallthru
      _
    %v26 = vld [vmem:[%s0] sm:$0xff]
    %v27 = vld [vmem:[%s0 + $0x8] sm:$0xff]
    %v28 = vlaneseq
    %v29 = vand.u32 %v28, 127
    %30 = vset.pattern.permute.xlu0 0
    %31 = vperm.xlu0 %30, %v26
    %v32 = vpop.permute.xlu0 %31
    %33 = vset.pattern.permute.xlu0 0
    %34 = vperm.xlu0 %33, %v27
    %v35 = vpop.permute.xlu0 %34
    %vm36 = vcmp.eq.s32.totalorder %v29, %v32
    %vm37 = vcmp.eq.s32.totalorder %v29, %v35
    %v38 = vsel %vm36, 1, 0
    %v39 = vsel %vm37, 1, 0
    %v40 = vcvt.s32.f32 %v38
    %v41 = vcvt.s32.f32 %v39
    %v42 = vld [vmem:[#allocation2] sm:$0xff]
    %v43 = vld [vmem:[#allocation2 + $0x8] sm:$0xff]
    %v44 = vld [vmem:[#allocation2 + $0x10] sm:$0xff]
    %v45 = vld [vmem:[#allocation2 + $0x18] sm:$0xff]
    %v46 = vld [vmem:[#allocation2 + $0x20] sm:$0xff]
    %v47 = vld [vmem:[#allocation2 + $0x28] sm:$0xff]
    %vm48 = vcmask 130048
    %v50 = vsel %vm48, %v40, 0
    %v53 = vsel %vm48, %v41, 0
    %55 = vmatprep.subr.mxu0 %v43
    %56 = vmatpush1.msra.mxu0 %v42
    %57 = vmatprep.subr.mxu0 %v46
    %58 = vmatpush1.msra.mxu0 %v45
    %59 = vmatprep.subr.mxu0 0.0
    %60 = vmatpush1.msra.mxu0 0.0
    %61 = vmatprep.subr.mxu0 0.0
    %62 = vmatpush1.msra.mxu0 0.0
    %63 = vmatprep.subr.mxu0 0.0
    %64 = vmatpush1.msra.mxu0 0.0
    %65 = vmatprep.subr.mxu0 0.0
    %66 = vmatpush1.msra.mxu0 0.0
    %67 = vmatprep.subr.mxu0 0.0
    %68 = vmatpush1.msra.mxu0 0.0
    %69 = vmatprep.subr.mxu0 0.0
    %70 = vmatpush1.msra.mxu0 0.0
    %71 = vmatprep.subr.mxu0 0.0
    %72 = vmatpush1.msra.mxu0 0.0
    %73 = vmatprep.subr.mxu0 0.0
    %74 = vmatpush1.msra.mxu0 0.0
    %75 = vmatprep.subr.mxu0 0.0
    %76 = vmatpush1.msra.mxu0 0.0
    %77 = vmatprep.subr.mxu0 0.0
    %78 = vmatpush1.msra.mxu0 0.0
    %79 = vmatprep.subr.mxu0 0.0
    %80 = vmatpush1.msra.mxu0 0.0
    %81 = vmatprep.subr.mxu0 0.0
    %82 = vmatpush1.msra.mxu0 0.0
    %83 = vmatprep.subr.mxu0 0.0
    %84 = vmatpush1.msra.mxu0 0.0
    %85 = vmatprep.subr.mxu0 0.0
    %86 = vmatpush1.msra.mxu0 0.0
    %87 = vmatprep.subr.mxu0 0.0
    %88 = vmatpush1.msra.mxu0 0.0
    %89 = vmatprep.subr.mxu0 0.0
    %90 = vmatpush1.msra.mxu0 0.0
    %91 = vmatprep.subr.mxu0 0.0
    %92 = vmatpush1.msra.mxu0 0.0
    %93 = vmatprep.subr.mxu0 0.0
    %94 = vmatpush1.msra.mxu0 0.0
    %95 = vmatprep.subr.mxu0 0.0
    %96 = vmatpush1.msra.mxu0 0.0
    %97 = vmatprep.subr.mxu0 0.0
    %98 = vmatpush1.msra.mxu0 0.0
    %99 = vmatprep.subr.mxu0 0.0
    %100 = vmatpush1.msra.mxu0 0.0
    %101 = vmatprep.subr.mxu0 0.0
    %102 = vmatpush1.msra.mxu0 0.0
    %103 = vmatprep.subr.mxu0 0.0
    %104 = vmatpush1.msra.mxu0 0.0
    %105 = vmatprep.subr.mxu0 0.0
    %106 = vmatpush1.msra.mxu0 0.0
    %107 = vmatprep.subr.mxu0 0.0
    %108 = vmatpush1.msra.mxu0 0.0
    %109 = vmatprep.subr.mxu0 0.0
    %110 = vmatpush1.msra.mxu0 0.0
    %111 = vmatprep.subr.mxu0 0.0
    %112 = vmatpush1.msra.mxu0 0.0
    %113 = vmatprep.subr.mxu0 0.0
    %114 = vmatpush1.msra.mxu0 0.0
    %115 = vmatprep.subr.mxu0 0.0
    %116 = vmatpush1.msra.mxu0 0.0
    %117 = vmatprep.subr.mxu0 0.0
    %118 = vmatpush1.msra.mxu0 0.0
    %119 = vmatprep.mubr.f32.mxu0 0.0
    %120 = vmatmul.mubr.f32.gmra.mrb[0].mxu0 %v50
    %v121 = vpop.f32.mrb[0].mxu0
    %v122 = vadd.f32 0.0, %v121
    %v123 = vpop.f32.mrb[0].mxu0
    %v124 = vadd.f32 0.0, %v123
    %125 = vmatprep.mubr.f32.mxu0 0.0
    %126 = vmatmul.mubr.f32.gmra.mrb[0].mxu0 %v53
    %v127 = vpop.f32.mrb[0].mxu0
    %v128 = vadd.f32 0.0, %v127
    %v129 = vpop.f32.mrb[0].mxu0
    %v130 = vadd.f32 0.0, %v129
    %131 = vdwg.mxu0
    %132 = vmatprep.subr.mxu0 0.0
    %133 = vmatpush1.msra.mxu0 %v44
    %134 = vmatprep.subr.mxu0 0.0
    %135 = vmatpush1.msra.mxu0 %v47
    %136 = vmatprep.subr.mxu0 0.0
    %137 = vmatpush1.msra.mxu0 0.0
    %138 = vmatprep.subr.mxu0 0.0
    %139 = vmatpush1.msra.mxu0 0.0
    %140 = vmatprep.subr.mxu0 0.0
    %141 = vmatpush1.msra.mxu0 0.0
    %142 = vmatprep.subr.mxu0 0.0
    %143 = vmatpush1.msra.mxu0 0.0
    %144 = vmatprep.subr.mxu0 0.0
    %145 = vmatpush1.msra.mxu0 0.0
    %146 = vmatprep.subr.mxu0 0.0
    %147 = vmatpush1.msra.mxu0 0.0
    %148 = vmatprep.subr.mxu0 0.0
    %149 = vmatpush1.msra.mxu0 0.0
    %150 = vmatprep.subr.mxu0 0.0
    %151 = vmatpush1.msra.mxu0 0.0
    %152 = vmatprep.subr.mxu0 0.0
    %153 = vmatpush1.msra.mxu0 0.0
    %154 = vmatprep.subr.mxu0 0.0
    %155 = vmatpush1.msra.mxu0 0.0
    %156 = vmatprep.subr.mxu0 0.0
    %157 = vmatpush1.msra.mxu0 0.0
    %158 = vmatprep.subr.mxu0 0.0
    %159 = vmatpush1.msra.mxu0 0.0
    %160 = vmatprep.subr.mxu0 0.0
    %161 = vmatpush1.msra.mxu0 0.0
    %162 = vmatprep.subr.mxu0 0.0
    %163 = vmatpush1.msra.mxu0 0.0
    %164 = vmatprep.subr.mxu0 0.0
    %165 = vmatpush1.msra.mxu0 0.0
    %166 = vmatprep.subr.mxu0 0.0
    %167 = vmatpush1.msra.mxu0 0.0
    %168 = vmatprep.subr.mxu0 0.0
    %169 = vmatpush1.msra.mxu0 0.0
    %170 = vmatprep.subr.mxu0 0.0
    %171 = vmatpush1.msra.mxu0 0.0
    %172 = vmatprep.subr.mxu0 0.0
    %173 = vmatpush1.msra.mxu0 0.0
    %174 = vmatprep.subr.mxu0 0.0
    %175 = vmatpush1.msra.mxu0 0.0
    %176 = vmatprep.subr.mxu0 0.0
    %177 = vmatpush1.msra.mxu0 0.0
    %178 = vmatprep.subr.mxu0 0.0
    %179 = vmatpush1.msra.mxu0 0.0
    %180 = vmatprep.subr.mxu0 0.0
    %181 = vmatpush1.msra.mxu0 0.0
    %182 = vmatprep.subr.mxu0 0.0
    %183 = vmatpush1.msra.mxu0 0.0
    %184 = vmatprep.subr.mxu0 0.0
    %185 = vmatpush1.msra.mxu0 0.0
    %186 = vmatprep.subr.mxu0 0.0
    %187 = vmatpush1.msra.mxu0 0.0
    %188 = vmatprep.subr.mxu0 0.0
    %189 = vmatpush1.msra.mxu0 0.0
    %190 = vmatprep.subr.mxu0 0.0
    %191 = vmatpush1.msra.mxu0 0.0
    %192 = vmatprep.subr.mxu0 0.0
    %193 = vmatpush1.msra.mxu0 0.0
    %194 = vmatprep.subr.mxu0 0.0
    %195 = vmatpush1.msra.mxu0 0.0
    %196 = vmatprep.mubr.f32.mxu0 0.0
    %197 = vmatmul.mubr.f32.gmra.mrb[0].mxu0 %v50
    %v198 = vpop.f32.mrb[0].mxu0
    %v199 = vadd.f32 0.0, %v198
    %v200 = vpop.f32.mrb[0].mxu0
    %201 = vmatprep.mubr.f32.mxu0 0.0
    %202 = vmatmul.mubr.f32.gmra.mrb[0].mxu0 %v53
    %v203 = vpop.f32.mrb[0].mxu0
    %v204 = vadd.f32 0.0, %v203
    %v205 = vpop.f32.mrb[0].mxu0
    %206 = vdwg.mxu0
    %207 = vst [vmem:[#allocation5] sm:$0xff] %v122
    %208 = vst [vmem:[#allocation5 + $0x8] sm:$0xff] %v124
    %209 = vst [vmem:[#allocation5 + $0x10] sm:$0xff] %v199
    %210 = vst [vmem:[#allocation5 + $0x18] sm:$0xff] %v128
    %211 = vst [vmem:[#allocation5 + $0x20] sm:$0xff] %v130
    %212 = vst [vmem:[#allocation5 + $0x28] sm:$0xff] %v204
    // Predicated region
    $region14: #{tpu_custom_call.1} parent=1 // pred_check
      _
    $region15: #{tpu_custom_call.1} parent=1 // pred_check_branch
      %214 = sbr.rel (0) target = $region17
    $region16: #{tpu_custom_call.1} parent=1 // pred_region
      %s216 = ssub.s32 768, 768
      %217 = vsyncadd [#allocation4], %s216
      %s218 = sshll.u32 [#allocation5], 4
      %s219 = int_to_ptr.vmem [resolvable:$true] %s218
      %224 = dma.vmem_to_hbm [thread:$0]  %s219, 768, %s2, [#allocation4], 384, 384, 24
    $region17: #{tpu_custom_call.1} parent=1 // pred_fallthru
      _
    // Predicated region
    $region18: #{tpu_custom_call.1} parent=1 // pred_check
      _
    $region19: #{tpu_custom_call.1} parent=1 // pred_check_branch
      %226 = sbr.rel (0) target = $region21
    $region20: #{tpu_custom_call.1} parent=1 // pred_region
      %227 = dma.done [#allocation4], 768
    $region21: #{tpu_custom_call.1} parent=1 // pred_fallthru
      _
    %228 = vsyncpa [#allocation3], 1
    %229 = vsyncpa [#allocation4], 1

</llo_original>
